<compile_context>
chip_gen: v5e
topology: v5e:2x2
jax: 0.10.0
libtpu: 0.0.40
codegen_flags: <defaults>
</compile_context>

<pallas_src>
import jax
import jax.numpy as jnp
from jax.experimental import pallas as pl
from jax.experimental.pallas import tpu as pltpu

# ---------------------------------------------------------------------------
# Problem sizes (small NCHW image inputs, like the PyTorch module expects)
# ---------------------------------------------------------------------------
B = 2                  # example batch
C = 4                  # channels
HW = 16                # H = W = 16
D_IN = C * HW * HW     # 1024 flattened features
HIDDEN = 128
EMB = 128              # lane-dense embedding width (multiple of 128)
MARGIN = 1.0
EPS = 1e-6             # torch.nn.TripletMarginLoss default eps

LANES = 128            # lane-dense output width
TB_MAX = 128           # max rows per grid step (multiple of 8)


def _pad_and_tile(n):
    """Pad batch to a sublane-aligned size and pick the per-step tile."""
    n8 = ((n + 7) // 8) * 8
    if n8 <= TB_MAX:
        return n8, n8                       # single grid step, full tile
    n_pad = ((n + TB_MAX - 1) // TB_MAX) * TB_MAX
    return n_pad, TB_MAX


def _flatten_pad(x, n_pad):
    n = x.shape[0]
    xf = x.reshape(n, -1).astype(jnp.float32)
    if n_pad > n:
        xf = jnp.pad(xf, ((0, n_pad - n), (0, 0)))
    return xf


# ---------------------------------------------------------------------------
# Fused kernel: 3x embedding MLP + triplet-margin loss + predict (per tile)
# ---------------------------------------------------------------------------
def _fused_triplet_kernel(a_ref, p_ref, n_ref, w1_ref, b1_ref, w2_ref, b2_ref,
                          loss_ref, pred_ref):
    # Weights are VMEM-resident across grid steps (constant index_map).
    w1 = w1_ref[...]                      # bf16 [D_IN, HIDDEN]
    b1 = b1_ref[...]                      # f32  [1, HIDDEN]
    w2 = w2_ref[...]                      # bf16 [HIDDEN, EMB]
    b2 = b2_ref[...]                      # f32  [1, EMB]

    def embed(x_ref):
        x = x_ref[...].astype(jnp.bfloat16)                       # [TB, D_IN]
        h = jnp.dot(x, w1, preferred_element_type=jnp.float32) + b1
        h = jnp.maximum(h, 0.0)                                   # ReLU in f32
        return jnp.dot(h.astype(jnp.bfloat16), w2,
                       preferred_element_type=jnp.float32) + b2   # [TB, EMB] f32

    a_e = embed(a_ref)
    p_e = embed(p_ref)
    n_e = embed(n_ref)

    diff_p = a_e - p_e
    diff_n = a_e - n_e

    # torch.nn.TripletMarginLoss (p=2): eps added to the difference before the
    # norm (matches F.pairwise_distance).
    d_ap = jnp.sqrt(jnp.sum((diff_p + EPS) ** 2, axis=-1, keepdims=True))  # [TB,1]
    d_an = jnp.sqrt(jnp.sum((diff_n + EPS) ** 2, axis=-1, keepdims=True))  # [TB,1]
    loss = jnp.maximum(d_ap - d_an + MARGIN, 0.0)                          # [TB,1]

    # torch _predict: plain L2 norms (no eps); compare squared distances
    # (monotone-equivalent, skips two sqrts). pred = 0 if d_ap >= d_an else 1.
    dp2 = jnp.sum(diff_p * diff_p, axis=-1, keepdims=True)
    dn2 = jnp.sum(diff_n * diff_n, axis=-1, keepdims=True)
    pred = jnp.where(dp2 >= dn2, 0.0, 1.0)                                 # [TB,1]

    # Lane-dense, unmasked full-tile stores.
    loss_ref[...] = jnp.broadcast_to(loss, loss_ref.shape)
    pred_ref[...] = jnp.broadcast_to(pred, pred_ref.shape)


def _fused_call(params, a, p, n, n_pad, tb):
    w1, b1, w2, b2 = params
    grid = (n_pad // tb,)

    flops = 2 * (3 * n_pad) * D_IN * HIDDEN + 2 * (3 * n_pad) * HIDDEN * EMB
    trans = 2 * n_pad
    bytes_acc = (3 * n_pad * D_IN * 4          # a/p/n (f32)
                 + D_IN * HIDDEN * 2           # w1 (bf16)
                 + HIDDEN * 4                  # b1 (f32)
                 + HIDDEN * EMB * 2            # w2 (bf16)
                 + EMB * 4                     # b2 (f32)
                 + 2 * n_pad * LANES * 4)      # loss + pred tiles

    io_spec = pl.BlockSpec((tb, D_IN), lambda i: (i, 0))
    w1_spec = pl.BlockSpec((D_IN, HIDDEN), lambda i: (0, 0))   # resident
    b1_spec = pl.BlockSpec((1, HIDDEN), lambda i: (0, 0))
    w2_spec = pl.BlockSpec((HIDDEN, EMB), lambda i: (0, 0))
    b2_spec = pl.BlockSpec((1, EMB), lambda i: (0, 0))
    out_spec = pl.BlockSpec((tb, LANES), lambda i: (i, 0))

    return pl.pallas_call(
        _fused_triplet_kernel,
        out_shape=(jax.ShapeDtypeStruct((n_pad, LANES), jnp.float32),
                   jax.ShapeDtypeStruct((n_pad, LANES), jnp.float32)),
        grid=grid,
        in_specs=[io_spec, io_spec, io_spec, w1_spec, b1_spec, w2_spec, b2_spec],
        out_specs=[out_spec, out_spec],
        compiler_params=pltpu.CompilerParams(
            dimension_semantics=("parallel",)),
        cost_estimate=pl.CostEstimate(
            flops=flops, transcendentals=trans, bytes_accessed=bytes_acc),
    )(a, p, n, w1, b1, w2, b2)


# ---------------------------------------------------------------------------
# Standalone embedding kernel (TripletModel_v2.get_embedding)
# ---------------------------------------------------------------------------
def _embed_kernel(x_ref, w1_ref, b1_ref, w2_ref, b2_ref, o_ref):
    x = x_ref[...].astype(jnp.bfloat16)
    h = jnp.maximum(
        jnp.dot(x, w1_ref[...], preferred_element_type=jnp.float32) + b1_ref[...],
        0.0)
    o_ref[...] = (jnp.dot(h.astype(jnp.bfloat16), w2_ref[...],
                          preferred_element_type=jnp.float32)
                  + b2_ref[...]).astype(o_ref.dtype)


# ---------------------------------------------------------------------------
# Module API (forward / predict_with_loss / get_embedding)
# ---------------------------------------------------------------------------
def init_params(key):
    k1, k2, k3, k4 = jax.random.split(key, 4)
    w1 = (jax.random.normal(k1, (D_IN, HIDDEN), jnp.float32)
          * (1.0 / jnp.sqrt(D_IN))).astype(jnp.bfloat16)
    b1 = jax.random.normal(k2, (1, HIDDEN), jnp.float32) * 0.01
    w2 = (jax.random.normal(k3, (HIDDEN, EMB), jnp.float32)
          * (1.0 / jnp.sqrt(HIDDEN))).astype(jnp.bfloat16)
    b2 = jax.random.normal(k4, (1, EMB), jnp.float32) * 0.01
    return (w1, b1, w2, b2)


@jax.jit
def triplet_stats(params, anchor, positive, negative):
    """Single fused launch returning (per_sample_loss [N], pred [N], mean loss)."""
    n = anchor.shape[0]
    n_pad, tb = _pad_and_tile(n)
    a = _flatten_pad(anchor, n_pad)
    p = _flatten_pad(positive, n_pad)
    ng = _flatten_pad(negative, n_pad)
    loss_t, pred_t = _fused_call(params, a, p, ng, n_pad, tb)
    loss_b = loss_t[:n, 0]
    pred_y = pred_t[:n, 0]
    mean_loss = jnp.mean(loss_b)
    return loss_b, pred_y, mean_loss


def triplet_forward(params, anchor, positive, negative):
    """TripletModel_v2.forward: mean-reduced triplet-margin loss (scalar)."""
    return triplet_stats(params, anchor, positive, negative)[2]


def predict_with_loss(params, anchor, positive, negative):
    """TripletModel_v2.predict_with_loss: (pred_y [N], mean loss scalar)."""
    _, pred_y, mean_loss = triplet_stats(params, anchor, positive, negative)
    return pred_y, mean_loss


def per_sample_loss(params, anchor, positive, negative):
    """Per-sample (reduction='none') triplet loss, from the same fused call."""
    return triplet_stats(params, anchor, positive, negative)[0]


@jax.jit
def get_embedding(params, x):
    """TripletModel_v2.get_embedding."""
    w1, b1, w2, b2 = params
    n = x.shape[0]
    n_pad, tb = _pad_and_tile(n)
    xf = _flatten_pad(x, n_pad)

    flops = 2 * n_pad * D_IN * HIDDEN + 2 * n_pad * HIDDEN * EMB
    bytes_acc = (n_pad * D_IN * 4 + D_IN * HIDDEN * 2 + HIDDEN * 4
                 + HIDDEN * EMB * 2 + EMB * 4 + n_pad * EMB * 4)

    emb = pl.pallas_call(
        _embed_kernel,
        out_shape=jax.ShapeDtypeStruct((n_pad, EMB), jnp.float32),
        grid=(n_pad // tb,),
        in_specs=[pl.BlockSpec((tb, D_IN), lambda i: (i, 0)),
                  pl.BlockSpec((D_IN, HIDDEN), lambda i: (0, 0)),
                  pl.BlockSpec((1, HIDDEN), lambda i: (0, 0)),
                  pl.BlockSpec((HIDDEN, EMB), lambda i: (0, 0)),
                  pl.BlockSpec((1, EMB), lambda i: (0, 0))],
        out_specs=pl.BlockSpec((tb, EMB), lambda i: (i, 0)),
        compiler_params=pltpu.CompilerParams(
            dimension_semantics=("parallel",)),
        cost_estimate=pl.CostEstimate(
            flops=flops, transcendentals=0, bytes_accessed=bytes_acc),
    )(xf, w1, b1, w2, b2)
    return emb[:n]


# ---------------------------------------------------------------------------
# Pure-JAX reference (same bf16-operand / f32-accumulate math)
# ---------------------------------------------------------------------------
def _ref_embed(params, x):
    w1, b1, w2, b2 = params
    xb = x.reshape(x.shape[0], -1).astype(jnp.bfloat16)
    h = jnp.maximum(jnp.dot(xb, w1, preferred_element_type=jnp.float32) + b1, 0.0)
    return jnp.dot(h.astype(jnp.bfloat16), w2,
                   preferred_element_type=jnp.float32) + b2


if __name__ == "__main__":
    key = jax.random.PRNGKey(0)
    kp, ka, kpp, kn = jax.random.split(key, 4)
    params = init_params(kp)

    anchor = jax.random.normal(ka, (B, C, HW, HW), jnp.float32)
    positive = jax.random.normal(kpp, (B, C, HW, HW), jnp.float32)
    negative = jax.random.normal(kn, (B, C, HW, HW), jnp.float32)

    loss_b, pred_y, mean_loss = triplet_stats(params, anchor, positive, negative)
    fwd_loss = triplet_forward(params, anchor, positive, negative)
    emb_a = get_embedding(params, anchor)
    jax.block_until_ready((loss_b, pred_y, mean_loss, fwd_loss, emb_a))

    # ---- correctness check against pure-JAX reference ----
    a_ref = _ref_embed(params, anchor)
    p_ref = _ref_embed(params, positive)
    n_ref = _ref_embed(params, negative)
    d_ap = jnp.sqrt(jnp.sum((a_ref - p_ref + EPS) ** 2, axis=-1))
    d_an = jnp.sqrt(jnp.sum((a_ref - n_ref + EPS) ** 2, axis=-1))
    loss_ref = jnp.maximum(d_ap - d_an + MARGIN, 0.0)
    mean_ref = jnp.mean(loss_ref)
    dp = jnp.sqrt(jnp.sum((a_ref - p_ref) ** 2, axis=-1))
    dn = jnp.sqrt(jnp.sum((a_ref - n_ref) ** 2, axis=-1))
    pred_ref = jnp.where(dp - dn >= 0.0, 0.0, 1.0)

    assert jnp.allclose(emb_a, a_ref, atol=2e-2, rtol=2e-2)
    assert jnp.allclose(loss_b, loss_ref, atol=5e-2, rtol=5e-2)
    assert jnp.allclose(mean_loss, mean_ref, atol=5e-2, rtol=5e-2)
    assert jnp.allclose(fwd_loss, mean_ref, atol=5e-2, rtol=5e-2)
    assert bool(jnp.all(pred_y == pred_ref))

    print("KERNEL_OK")
</pallas_src>

<mosaic_0001>
module attributes {stable_mosaic.version = 11 : i64} {
  func.func @_fused_triplet_kernel(%arg0: i32, %arg1: memref<8x1024xf32, #tpu.memory_space<vmem>>, %arg2: memref<8x1024xf32, #tpu.memory_space<vmem>>, %arg3: memref<8x1024xf32, #tpu.memory_space<vmem>>, %arg4: memref<1024x128xbf16, #tpu.memory_space<vmem>>, %arg5: memref<1x128xf32, #tpu.memory_space<vmem>>, %arg6: memref<128x128xbf16, #tpu.memory_space<vmem>>, %arg7: memref<1x128xf32, #tpu.memory_space<vmem>>, %arg8: memref<8x128xf32, #tpu.memory_space<vmem>>, %arg9: memref<8x128xf32, #tpu.memory_space<vmem>>) attributes {dimension_semantics = [#tpu.dimension_semantics<parallel>], iteration_bounds = array<i64: 1>, scalar_prefetch = 0 : i64, scratch_operands = 0 : i64, tpu.core_type = #tpu.core_type<tc>, window_params = [{transform_indices = @transform_0, window_bounds = array<i64: 8, 1024>}, {transform_indices = @transform_1, window_bounds = array<i64: 8, 1024>}, {transform_indices = @transform_2, window_bounds = array<i64: 8, 1024>}, {pipeline_mode = #tpu.pipeline_mode<synchronous>, transform_indices = @transform_3, window_bounds = array<i64: 1024, 128>}, {pipeline_mode = #tpu.pipeline_mode<synchronous>, transform_indices = @transform_4, window_bounds = array<i64: 1, 128>}, {pipeline_mode = #tpu.pipeline_mode<synchronous>, transform_indices = @transform_5, window_bounds = array<i64: 128, 128>}, {pipeline_mode = #tpu.pipeline_mode<synchronous>, transform_indices = @transform_6, window_bounds = array<i64: 1, 128>}, {transform_indices = @transform_7, window_bounds = array<i64: 8, 128>}, {transform_indices = @transform_8, window_bounds = array<i64: 8, 128>}]} {
    %c0 = arith.constant 0 : index
    %c0_0 = arith.constant 0 : index
    %0 = vector.load %arg4[%c0, %c0_0] : memref<1024x128xbf16, #tpu.memory_space<vmem>>, vector<1024x128xbf16>
    %c0_1 = arith.constant 0 : index
    %c0_2 = arith.constant 0 : index
    %1 = vector.load %arg5[%c0_1, %c0_2] : memref<1x128xf32, #tpu.memory_space<vmem>>, vector<1x128xf32>
    %c0_3 = arith.constant 0 : index
    %c0_4 = arith.constant 0 : index
    %2 = vector.load %arg6[%c0_3, %c0_4] : memref<128x128xbf16, #tpu.memory_space<vmem>>, vector<128x128xbf16>
    %c0_5 = arith.constant 0 : index
    %c0_6 = arith.constant 0 : index
    %3 = vector.load %arg7[%c0_5, %c0_6] : memref<1x128xf32, #tpu.memory_space<vmem>>, vector<1x128xf32>
    %c0_7 = arith.constant 0 : index
    %c0_8 = arith.constant 0 : index
    %4 = vector.load %arg1[%c0_7, %c0_8] : memref<8x1024xf32, #tpu.memory_space<vmem>>, vector<8x1024xf32>
    %5 = arith.truncf %4 : vector<8x1024xf32> to vector<8x1024xbf16>
    %cst = arith.constant dense<0.000000e+00> : vector<8x128xf32>
    %6 = tpu.matmul %5, %0, %cst {dimension_numbers = #tpu.dot_dimension_numbers<[1], [0], [0], [1], [0, 0, 1, 1], [], []>} : vector<8x1024xbf16>, vector<1024x128xbf16>, vector<8x128xf32> -> vector<8x128xf32>
    %7 = vector.broadcast %1 : vector<1x128xf32> to vector<8x128xf32>
    %8 = arith.addf %6, %7 : vector<8x128xf32>
    %cst_9 = arith.constant 0.000000e+00 : f32
    %9 = vector.broadcast %cst_9 : f32 to vector<8x128xf32>
    %10 = arith.maximumf %8, %9 : vector<8x128xf32>
    %11 = arith.truncf %10 : vector<8x128xf32> to vector<8x128xbf16>
    %cst_10 = arith.constant dense<0.000000e+00> : vector<8x128xf32>
    %12 = tpu.matmul %11, %2, %cst_10 {dimension_numbers = #tpu.dot_dimension_numbers<[1], [0], [0], [1], [0, 0, 1, 1], [], []>} : vector<8x128xbf16>, vector<128x128xbf16>, vector<8x128xf32> -> vector<8x128xf32>
    %13 = vector.broadcast %3 : vector<1x128xf32> to vector<8x128xf32>
    %14 = arith.addf %12, %13 : vector<8x128xf32>
    %c0_11 = arith.constant 0 : index
    %c0_12 = arith.constant 0 : index
    %15 = vector.load %arg2[%c0_11, %c0_12] : memref<8x1024xf32, #tpu.memory_space<vmem>>, vector<8x1024xf32>
    %16 = arith.truncf %15 : vector<8x1024xf32> to vector<8x1024xbf16>
    %cst_13 = arith.constant dense<0.000000e+00> : vector<8x128xf32>
    %17 = tpu.matmul %16, %0, %cst_13 {dimension_numbers = #tpu.dot_dimension_numbers<[1], [0], [0], [1], [0, 0, 1, 1], [], []>} : vector<8x1024xbf16>, vector<1024x128xbf16>, vector<8x128xf32> -> vector<8x128xf32>
    %18 = vector.broadcast %1 : vector<1x128xf32> to vector<8x128xf32>
    %19 = arith.addf %17, %18 : vector<8x128xf32>
    %cst_14 = arith.constant 0.000000e+00 : f32
    %20 = vector.broadcast %cst_14 : f32 to vector<8x128xf32>
    %21 = arith.maximumf %19, %20 : vector<8x128xf32>
    %22 = arith.truncf %21 : vector<8x128xf32> to vector<8x128xbf16>
    %cst_15 = arith.constant dense<0.000000e+00> : vector<8x128xf32>
    %23 = tpu.matmul %22, %2, %cst_15 {dimension_numbers = #tpu.dot_dimension_numbers<[1], [0], [0], [1], [0, 0, 1, 1], [], []>} : vector<8x128xbf16>, vector<128x128xbf16>, vector<8x128xf32> -> vector<8x128xf32>
    %24 = vector.broadcast %3 : vector<1x128xf32> to vector<8x128xf32>
    %25 = arith.addf %23, %24 : vector<8x128xf32>
    %c0_16 = arith.constant 0 : index
    %c0_17 = arith.constant 0 : index
    %26 = vector.load %arg3[%c0_16, %c0_17] : memref<8x1024xf32, #tpu.memory_space<vmem>>, vector<8x1024xf32>
    %27 = arith.truncf %26 : vector<8x1024xf32> to vector<8x1024xbf16>
    %cst_18 = arith.constant dense<0.000000e+00> : vector<8x128xf32>
    %28 = tpu.matmul %27, %0, %cst_18 {dimension_numbers = #tpu.dot_dimension_numbers<[1], [0], [0], [1], [0, 0, 1, 1], [], []>} : vector<8x1024xbf16>, vector<1024x128xbf16>, vector<8x128xf32> -> vector<8x128xf32>
    %29 = vector.broadcast %1 : vector<1x128xf32> to vector<8x128xf32>
    %30 = arith.addf %28, %29 : vector<8x128xf32>
    %cst_19 = arith.constant 0.000000e+00 : f32
    %31 = vector.broadcast %cst_19 : f32 to vector<8x128xf32>
    %32 = arith.maximumf %30, %31 : vector<8x128xf32>
    %33 = arith.truncf %32 : vector<8x128xf32> to vector<8x128xbf16>
    %cst_20 = arith.constant dense<0.000000e+00> : vector<8x128xf32>
    %34 = tpu.matmul %33, %2, %cst_20 {dimension_numbers = #tpu.dot_dimension_numbers<[1], [0], [0], [1], [0, 0, 1, 1], [], []>} : vector<8x128xbf16>, vector<128x128xbf16>, vector<8x128xf32> -> vector<8x128xf32>
    %35 = vector.broadcast %3 : vector<1x128xf32> to vector<8x128xf32>
    %36 = arith.addf %34, %35 : vector<8x128xf32>
    %37 = arith.subf %14, %25 : vector<8x128xf32>
    %38 = arith.subf %14, %36 : vector<8x128xf32>
    %cst_21 = arith.constant 9.99999997E-7 : f32
    %39 = vector.broadcast %cst_21 : f32 to vector<8x128xf32>
    %40 = arith.addf %37, %39 : vector<8x128xf32>
    %41 = arith.mulf %40, %40 : vector<8x128xf32>
    %cst_22 = arith.constant dense<0.000000e+00> : vector<8xf32>
    %42 = vector.multi_reduction <add>, %41, %cst_22 [1] : vector<8x128xf32> to vector<8xf32>
    %43 = vector.shape_cast %42 : vector<8xf32> to vector<8x1xf32>
    %44 = math.sqrt %43 : vector<8x1xf32>
    %cst_23 = arith.constant 9.99999997E-7 : f32
    %45 = vector.broadcast %cst_23 : f32 to vector<8x128xf32>
    %46 = arith.addf %38, %45 : vector<8x128xf32>
    %47 = arith.mulf %46, %46 : vector<8x128xf32>
    %cst_24 = arith.constant dense<0.000000e+00> : vector<8xf32>
    %48 = vector.multi_reduction <add>, %47, %cst_24 [1] : vector<8x128xf32> to vector<8xf32>
    %49 = vector.shape_cast %48 : vector<8xf32> to vector<8x1xf32>
    %50 = math.sqrt %49 : vector<8x1xf32>
    %51 = arith.subf %44, %50 : vector<8x1xf32>
    %cst_25 = arith.constant 1.000000e+00 : f32
    %52 = vector.broadcast %cst_25 : f32 to vector<8x1xf32>
    %53 = arith.addf %51, %52 : vector<8x1xf32>
    %cst_26 = arith.constant 0.000000e+00 : f32
    %54 = vector.broadcast %cst_26 : f32 to vector<8x1xf32>
    %55 = arith.maximumf %53, %54 : vector<8x1xf32>
    %56 = arith.mulf %37, %37 : vector<8x128xf32>
    %cst_27 = arith.constant dense<0.000000e+00> : vector<8xf32>
    %57 = vector.multi_reduction <add>, %56, %cst_27 [1] : vector<8x128xf32> to vector<8xf32>
    %58 = vector.shape_cast %57 : vector<8xf32> to vector<8x1xf32>
    %59 = arith.mulf %38, %38 : vector<8x128xf32>
    %cst_28 = arith.constant dense<0.000000e+00> : vector<8xf32>
    %60 = vector.multi_reduction <add>, %59, %cst_28 [1] : vector<8x128xf32> to vector<8xf32>
    %61 = vector.shape_cast %60 : vector<8xf32> to vector<8x1xf32>
    %62 = arith.cmpf oge, %58, %61 : vector<8x1xf32>
    %cst_29 = arith.constant 0.000000e+00 : f32
    %cst_30 = arith.constant 1.000000e+00 : f32
    %63 = vector.broadcast %cst_29 : f32 to vector<8x1xf32>
    %64 = vector.broadcast %cst_30 : f32 to vector<8x1xf32>
    %65 = arith.select %62, %63, %64 : vector<8x1xi1>, vector<8x1xf32>
    %66 = vector.shape_cast %55 : vector<8x1xf32> to vector<8x1xf32>
    %67 = vector.broadcast %66 : vector<8x1xf32> to vector<8x128xf32>
    %c0_31 = arith.constant 0 : index
    %c0_32 = arith.constant 0 : index
    %68 = vector.load %arg8[%c0_31, %c0_32] : memref<8x128xf32, #tpu.memory_space<vmem>>, vector<8x128xf32>
    tpu.vector_store %arg8[%c0_31, %c0_32], %67 {strides = array<i32>} : memref<8x128xf32, #tpu.memory_space<vmem>>, vector<8x128xf32>,
    %69 = vector.shape_cast %65 : vector<8x1xf32> to vector<8x1xf32>
    %70 = vector.broadcast %69 : vector<8x1xf32> to vector<8x128xf32>
    %c0_33 = arith.constant 0 : index
    %c0_34 = arith.constant 0 : index
    %71 = vector.load %arg9[%c0_33, %c0_34] : memref<8x128xf32, #tpu.memory_space<vmem>>, vector<8x128xf32>
    tpu.vector_store %arg9[%c0_33, %c0_34], %70 {strides = array<i32>} : memref<8x128xf32, #tpu.memory_space<vmem>>, vector<8x128xf32>,
    return
  }
  func.func @transform_0(%arg0: i32) -> (i32, i32) {
    %c0_i32 = arith.constant 0 : i32
    %c0_i32_0 = arith.constant 0 : i32
    return %arg0, %c0_i32 : i32, i32
  }
  func.func @transform_1(%arg0: i32) -> (i32, i32) {
    %c0_i32 = arith.constant 0 : i32
    %c0_i32_0 = arith.constant 0 : i32
    return %arg0, %c0_i32 : i32, i32
  }
  func.func @transform_2(%arg0: i32) -> (i32, i32) {
    %c0_i32 = arith.constant 0 : i32
    %c0_i32_0 = arith.constant 0 : i32
    return %arg0, %c0_i32 : i32, i32
  }
  func.func @transform_3(%arg0: i32) -> (i32, i32) {
    %c0_i32 = arith.constant 0 : i32
    %c0_i32_0 = arith.constant 0 : i32
    %c0_i32_1 = arith.constant 0 : i32
    return %c0_i32, %c0_i32_0 : i32, i32
  }
  func.func @transform_4(%arg0: i32) -> (i32, i32) {
    %c0_i32 = arith.constant 0 : i32
    %c0_i32_0 = arith.constant 0 : i32
    %c0_i32_1 = arith.constant 0 : i32
    return %c0_i32, %c0_i32_0 : i32, i32
  }
  func.func @transform_5(%arg0: i32) -> (i32, i32) {
    %c0_i32 = arith.constant 0 : i32
    %c0_i32_0 = arith.constant 0 : i32
    %c0_i32_1 = arith.constant 0 : i32
    return %c0_i32, %c0_i32_0 : i32, i32
  }
  func.func @transform_6(%arg0: i32) -> (i32, i32) {
    %c0_i32 = arith.constant 0 : i32
    %c0_i32_0 = arith.constant 0 : i32
    %c0_i32_1 = arith.constant 0 : i32
    return %c0_i32, %c0_i32_0 : i32, i32
  }
  func.func @transform_7(%arg0: i32) -> (i32, i32) {
    %c0_i32 = arith.constant 0 : i32
    %c0_i32_0 = arith.constant 0 : i32
    return %arg0, %c0_i32 : i32, i32
  }
  func.func @transform_8(%arg0: i32) -> (i32, i32) {
    %c0_i32 = arith.constant 0 : i32
    %c0_i32_0 = arith.constant 0 : i32
    return %arg0, %c0_i32 : i32, i32
  }
}

</mosaic_0001>

<llo_original>
// kernel: triplet_stats.1
$region0: #{triplet_stats.1}
  #allocation0 [shape = 'u32[]', space=smem, size = 0x4, offset = 0x4, fixed_abs, tag = 'smem constant byte address 0x4 - core index']
  #allocation1 [shape = 'u32[72,128]{1,0:T(1,128)}', space=vmem, size = 0x9000, scoped, tag = 'internal scratch']
  %s0 = inlined_call_operand.vmem [shape: f32[8,1024], index: 0, kind: input, shape index: {}]
  %s1 = inlined_call_operand.vmem [shape: f32[8,1024], index: 1, kind: input, shape index: {}]
  %s2 = inlined_call_operand.vmem [shape: f32[8,1024], index: 2, kind: input, shape index: {}]
  %s3 = inlined_call_operand.vmem [shape: bf16[1024,128], index: 3, kind: input, shape index: {}]
  %s4 = inlined_call_operand.vmem [shape: f32[1,128], index: 4, kind: input, shape index: {}]
  %s5 = inlined_call_operand.hbm [shape: bf16[128,128], index: 5, kind: input, shape index: {}]
  %s6 = inlined_call_operand.vmem [shape: f32[1,128], index: 6, kind: input, shape index: {}]
  %s7 = inlined_call_operand.vmem [shape: f32[8,128], index: 7, kind: output, shape index: {0}]
  %s8 = inlined_call_operand.vmem [shape: f32[8,128], index: 8, kind: output, shape index: {1}]
  %9 = xla_tuple %s7, %s8
  %s10 = sld [smem:[#allocation0]]
  $region50: #{triplet_stats.1} parent=0
    _
  %s12 = ssub.s32 1, %s10
  %s13 = scalar_select 0, %s12, %s10
  $region1: #{triplet_stats.1} parent=0
    #allocation2 [shape = 'u8[32768]{0}', space=vmem, size = 0x8000, scoped, tag = 'input window, operand 5, single buffered']
    #allocation3 [shape = 's32[1]{0}', space=sflag, size = 0x4, scoped, tag = 'scoped memory for triplet_stats.1']
    %14 = vsyncpa [#allocation3], 0
    // Predicated region
    $region2: #{triplet_stats.1} parent=1 // pred_check
      _
    $region3: #{triplet_stats.1} parent=1 // pred_check_branch
      %16 = sbr.rel (0) target = $region5
    $region4: #{triplet_stats.1} parent=1 // pred_region
      _
    $region5: #{triplet_stats.1} parent=1 // pred_fallthru
      _
    // Predicated region
    $region6: #{triplet_stats.1} parent=1 // pred_check
      _
    $region7: #{triplet_stats.1} parent=1 // pred_check_branch
      %18 = sbr.rel (0) target = $region9
    $region8: #{triplet_stats.1} parent=1 // pred_region
      _
    $region9: #{triplet_stats.1} parent=1 // pred_fallthru
      _
    // Predicated region
    $region10: #{triplet_stats.1} parent=1 // pred_check
      _
    $region11: #{triplet_stats.1} parent=1 // pred_check_branch
      %20 = sbr.rel (0) target = $region13
    $region12: #{triplet_stats.1} parent=1 // pred_region
      _
    $region13: #{triplet_stats.1} parent=1 // pred_fallthru
      _
    // Predicated region
    $region14: #{triplet_stats.1} parent=1 // pred_check
      _
    $region15: #{triplet_stats.1} parent=1 // pred_check_branch
      %22 = sbr.rel (0) target = $region17
    $region16: #{triplet_stats.1} parent=1 // pred_region
      _
    $region17: #{triplet_stats.1} parent=1 // pred_fallthru
      _
    // Predicated region
    $region18: #{triplet_stats.1} parent=1 // pred_check
      _
    $region19: #{triplet_stats.1} parent=1 // pred_check_branch
      %24 = sbr.rel (0) target = $region21
    $region20: #{triplet_stats.1} parent=1 // pred_region
      _
    $region21: #{triplet_stats.1} parent=1 // pred_fallthru
      _
    // Predicated region
    $region22: #{triplet_stats.1} parent=1 // pred_check
      _
    $region23: #{triplet_stats.1} parent=1 // pred_check_branch
      %26 = sbr.rel (0) target = $region25
    $region24: #{triplet_stats.1} parent=1 // pred_region
      %28 = vsyncadd [#allocation3], 0
      %s29 = sshll.u32 %s5, 4
      %s30 = int_to_ptr.hbm [resolvable:$true] %s29
      %s31 = sshll.u32 [#allocation2], 4
      %s32 = int_to_ptr.vmem [resolvable:$true] %s31
      %37 = dma.hbm_to_vmem [thread:$0]  %s30, 1024, %s32, [#allocation3], 64, 64, 4
    $region25: #{triplet_stats.1} parent=1 // pred_fallthru
      _
    // Predicated region
    $region26: #{triplet_stats.1} parent=1 // pred_check
      _
    $region27: #{triplet_stats.1} parent=1 // pred_check_branch
      %39 = sbr.rel (0) target = $region29
    $region28: #{triplet_stats.1} parent=1 // pred_region
      _
    $region29: #{triplet_stats.1} parent=1 // pred_fallthru
      _
    // Predicated region
    $region30: #{triplet_stats.1} parent=1 // pred_check
      _
    $region31: #{triplet_stats.1} parent=1 // pred_check_branch
      %41 = sbr.rel (0) target = $region33
    $region32: #{triplet_stats.1} parent=1 // pred_region
      %43 = dma.done [#allocation3], 1024
    $region33: #{triplet_stats.1} parent=1 // pred_fallthru
      _
    %v44 = vld [vmem:[%s3] sm:$0xf]
    %v45 = vld [vmem:[%s3 + $0x4] sm:$0xf]
    %v46 = vld [vmem:[%s3 + $0x8] sm:$0xf]
    %v47 = vld [vmem:[%s3 + $0xc] sm:$0xf]
    %v48 = vld [vmem:[%s3 + $0x10] sm:$0xf]
    %v49 = vld [vmem:[%s3 + $0x14] sm:$0xf]
    %v50 = vld [vmem:[%s3 + $0x18] sm:$0xf]
    %v51 = vld [vmem:[%s3 + $0x1c] sm:$0xf]
    %v52 = vld [vmem:[%s3 + $0x20] sm:$0xf]
    %v53 = vld [vmem:[%s3 + $0x24] sm:$0xf]
    %v54 = vld [vmem:[%s3 + $0x28] sm:$0xf]
    %v55 = vld [vmem:[%s3 + $0x2c] sm:$0xf]
    %v56 = vld [vmem:[%s3 + $0x30] sm:$0xf]
    %v57 = vld [vmem:[%s3 + $0x34] sm:$0xf]
    %v58 = vld [vmem:[%s3 + $0x38] sm:$0xf]
    %v59 = vld [vmem:[%s3 + $0x3c] sm:$0xf]
    %v60 = vld [vmem:[%s3 + $0x40] sm:$0xf]
    %v61 = vld [vmem:[%s3 + $0x44] sm:$0xf]
    %v62 = vld [vmem:[%s3 + $0x48] sm:$0xf]
    %v63 = vld [vmem:[%s3 + $0x4c] sm:$0xf]
    %v64 = vld [vmem:[%s3 + $0x50] sm:$0xf]
    %v65 = vld [vmem:[%s3 + $0x54] sm:$0xf]
    %v66 = vld [vmem:[%s3 + $0x58] sm:$0xf]
    %v67 = vld [vmem:[%s3 + $0x5c] sm:$0xf]
    %v68 = vld [vmem:[%s3 + $0x60] sm:$0xf]
    %v69 = vld [vmem:[%s3 + $0x64] sm:$0xf]
    %v70 = vld [vmem:[%s3 + $0x68] sm:$0xf]
    %v71 = vld [vmem:[%s3 + $0x6c] sm:$0xf]
    %v72 = vld [vmem:[%s3 + $0x70] sm:$0xf]
    %v73 = vld [vmem:[%s3 + $0x74] sm:$0xf]
    %v74 = vld [vmem:[%s3 + $0x78] sm:$0xf]
    %v75 = vld [vmem:[%s3 + $0x7c] sm:$0xf]
    %v76 = vld [vmem:[%s3 + $0x80] sm:$0xf]
    %v77 = vld [vmem:[%s3 + $0x84] sm:$0xf]
    %v78 = vld [vmem:[%s3 + $0x88] sm:$0xf]
    %v79 = vld [vmem:[%s3 + $0x8c] sm:$0xf]
    %v80 = vld [vmem:[%s3 + $0x90] sm:$0xf]
    %v81 = vld [vmem:[%s3 + $0x94] sm:$0xf]
    %v82 = vld [vmem:[%s3 + $0x98] sm:$0xf]
    %v83 = vld [vmem:[%s3 + $0x9c] sm:$0xf]
    %v84 = vld [vmem:[%s3 + $0xa0] sm:$0xf]
    %v85 = vld [vmem:[%s3 + $0xa4] sm:$0xf]
    %v86 = vld [vmem:[%s3 + $0xa8] sm:$0xf]
    %v87 = vld [vmem:[%s3 + $0xac] sm:$0xf]
    %v88 = vld [vmem:[%s3 + $0xb0] sm:$0xf]
    %v89 = vld [vmem:[%s3 + $0xb4] sm:$0xf]
    %v90 = vld [vmem:[%s3 + $0xb8] sm:$0xf]
    %v91 = vld [vmem:[%s3 + $0xbc] sm:$0xf]
    %v92 = vld [vmem:[%s3 + $0xc0] sm:$0xf]
    %v93 = vld [vmem:[%s3 + $0xc4] sm:$0xf]
    %v94 = vld [vmem:[%s3 + $0xc8] sm:$0xf]
    %v95 = vld [vmem:[%s3 + $0xcc] sm:$0xf]
    %v96 = vld [vmem:[%s3 + $0xd0] sm:$0xf]
    %v97 = vld [vmem:[%s3 + $0xd4] sm:$0xf]
    %v98 = vld [vmem:[%s3 + $0xd8] sm:$0xf]
    %v99 = vld [vmem:[%s3 + $0xdc] sm:$0xf]
    %v100 = vld [vmem:[%s3 + $0xe0] sm:$0xf]
    %v101 = vld [vmem:[%s3 + $0xe4] sm:$0xf]
    %v102 = vld [vmem:[%s3 + $0xe8] sm:$0xf]
    %v103 = vld [vmem:[%s3 + $0xec] sm:$0xf]
    %v104 = vld [vmem:[%s3 + $0xf0] sm:$0xf]
    %v105 = vld [vmem:[%s3 + $0xf4] sm:$0xf]
    %v106 = vld [vmem:[%s3 + $0xf8] sm:$0xf]
    %v107 = vld [vmem:[%s3 + $0xfc] sm:$0xf]
    %v108 = vld [vmem:[%s3 + $0x100] sm:$0xf]
    %v109 = vld [vmem:[%s3 + $0x104] sm:$0xf]
    %v110 = vld [vmem:[%s3 + $0x108] sm:$0xf]
    %v111 = vld [vmem:[%s3 + $0x10c] sm:$0xf]
    %v112 = vld [vmem:[%s3 + $0x110] sm:$0xf]
    %v113 = vld [vmem:[%s3 + $0x114] sm:$0xf]
    %v114 = vld [vmem:[%s3 + $0x118] sm:$0xf]
    %v115 = vld [vmem:[%s3 + $0x11c] sm:$0xf]
    %v116 = vld [vmem:[%s3 + $0x120] sm:$0xf]
    %v117 = vld [vmem:[%s3 + $0x124] sm:$0xf]
    %v118 = vld [vmem:[%s3 + $0x128] sm:$0xf]
    %v119 = vld [vmem:[%s3 + $0x12c] sm:$0xf]
    %v120 = vld [vmem:[%s3 + $0x130] sm:$0xf]
    %v121 = vld [vmem:[%s3 + $0x134] sm:$0xf]
    %v122 = vld [vmem:[%s3 + $0x138] sm:$0xf]
    %v123 = vld [vmem:[%s3 + $0x13c] sm:$0xf]
    %v124 = vld [vmem:[%s3 + $0x140] sm:$0xf]
    %v125 = vld [vmem:[%s3 + $0x144] sm:$0xf]
    %v126 = vld [vmem:[%s3 + $0x148] sm:$0xf]
    %v127 = vld [vmem:[%s3 + $0x14c] sm:$0xf]
    %v128 = vld [vmem:[%s3 + $0x150] sm:$0xf]
    %v129 = vld [vmem:[%s3 + $0x154] sm:$0xf]
    %v130 = vld [vmem:[%s3 + $0x158] sm:$0xf]
    %v131 = vld [vmem:[%s3 + $0x15c] sm:$0xf]
    %v132 = vld [vmem:[%s3 + $0x160] sm:$0xf]
    %v133 = vld [vmem:[%s3 + $0x164] sm:$0xf]
    %v134 = vld [vmem:[%s3 + $0x168] sm:$0xf]
    %v135 = vld [vmem:[%s3 + $0x16c] sm:$0xf]
    %v136 = vld [vmem:[%s3 + $0x170] sm:$0xf]
    %v137 = vld [vmem:[%s3 + $0x174] sm:$0xf]
    %v138 = vld [vmem:[%s3 + $0x178] sm:$0xf]
    %v139 = vld [vmem:[%s3 + $0x17c] sm:$0xf]
    %v140 = vld [vmem:[%s3 + $0x180] sm:$0xf]
    %v141 = vld [vmem:[%s3 + $0x184] sm:$0xf]
    %v142 = vld [vmem:[%s3 + $0x188] sm:$0xf]
    %v143 = vld [vmem:[%s3 + $0x18c] sm:$0xf]
    %v144 = vld [vmem:[%s3 + $0x190] sm:$0xf]
    %v145 = vld [vmem:[%s3 + $0x194] sm:$0xf]
    %v146 = vld [vmem:[%s3 + $0x198] sm:$0xf]
    %v147 = vld [vmem:[%s3 + $0x19c] sm:$0xf]
    %v148 = vld [vmem:[%s3 + $0x1a0] sm:$0xf]
    %v149 = vld [vmem:[%s3 + $0x1a4] sm:$0xf]
    %v150 = vld [vmem:[%s3 + $0x1a8] sm:$0xf]
    %v151 = vld [vmem:[%s3 + $0x1ac] sm:$0xf]
    %v152 = vld [vmem:[%s3 + $0x1b0] sm:$0xf]
    %v153 = vld [vmem:[%s3 + $0x1b4] sm:$0xf]
    %v154 = vld [vmem:[%s3 + $0x1b8] sm:$0xf]
    %v155 = vld [vmem:[%s3 + $0x1bc] sm:$0xf]
    %v156 = vld [vmem:[%s3 + $0x1c0] sm:$0xf]
    %v157 = vld [vmem:[%s3 + $0x1c4] sm:$0xf]
    %v158 = vld [vmem:[%s3 + $0x1c8] sm:$0xf]
    %v159 = vld [vmem:[%s3 + $0x1cc] sm:$0xf]
    %v160 = vld [vmem:[%s3 + $0x1d0] sm:$0xf]
    %v161 = vld [vmem:[%s3 + $0x1d4] sm:$0xf]
    %v162 = vld [vmem:[%s3 + $0x1d8] sm:$0xf]
    %v163 = vld [vmem:[%s3 + $0x1dc] sm:$0xf]
    %v164 = vld [vmem:[%s3 + $0x1e0] sm:$0xf]
    %v165 = vld [vmem:[%s3 + $0x1e4] sm:$0xf]
    %v166 = vld [vmem:[%s3 + $0x1e8] sm:$0xf]
    %v167 = vld [vmem:[%s3 + $0x1ec] sm:$0xf]
    %v168 = vld [vmem:[%s3 + $0x1f0] sm:$0xf]
    %v169 = vld [vmem:[%s3 + $0x1f4] sm:$0xf]
    %v170 = vld [vmem:[%s3 + $0x1f8] sm:$0xf]
    %v171 = vld [vmem:[%s3 + $0x1fc] sm:$0xf]
    %v172 = vld [vmem:[%s4] sm:$0x1]
    %v173 = vld [vmem:[#allocation2] sm:$0xf]
    %v174 = vld [vmem:[#allocation2 + $0x4] sm:$0xf]
    %v175 = vld [vmem:[#allocation2 + $0x8] sm:$0xf]
    %v176 = vld [vmem:[#allocation2 + $0xc] sm:$0xf]
    %v177 = vld [vmem:[#allocation2 + $0x10] sm:$0xf]
    %v178 = vld [vmem:[#allocation2 + $0x14] sm:$0xf]
    %v179 = vld [vmem:[#allocation2 + $0x18] sm:$0xf]
    %v180 = vld [vmem:[#allocation2 + $0x1c] sm:$0xf]
    %v181 = vld [vmem:[#allocation2 + $0x20] sm:$0xf]
    %v182 = vld [vmem:[#allocation2 + $0x24] sm:$0xf]
    %v183 = vld [vmem:[#allocation2 + $0x28] sm:$0xf]
    %v184 = vld [vmem:[#allocation2 + $0x2c] sm:$0xf]
    %v185 = vld [vmem:[#allocation2 + $0x30] sm:$0xf]
    %v186 = vld [vmem:[#allocation2 + $0x34] sm:$0xf]
    %v187 = vld [vmem:[#allocation2 + $0x38] sm:$0xf]
    %v188 = vld [vmem:[#allocation2 + $0x3c] sm:$0xf]
    %v189 = vld [vmem:[%s6] sm:$0x1]
    %v190 = vld [vmem:[%s0] sm:$0xff]
    %v191 = vld [vmem:[%s0 + $0x8] sm:$0xff]
    %v192 = vld [vmem:[%s0 + $0x10] sm:$0xff]
    %v193 = vld [vmem:[%s0 + $0x18] sm:$0xff]
    %v194 = vld [vmem:[%s0 + $0x20] sm:$0xff]
    %v195 = vld [vmem:[%s0 + $0x28] sm:$0xff]
    %v196 = vld [vmem:[%s0 + $0x30] sm:$0xff]
    %v197 = vld [vmem:[%s0 + $0x38] sm:$0xff]
    %v198 = vpack.c.bf16 %v190, %v190
    %v199 = vpack.c.bf16 %v191, %v191
    %v200 = vpack.c.bf16 %v192, %v192
    %v201 = vpack.c.bf16 %v193, %v193
    %v202 = vpack.c.bf16 %v194, %v194
    %v203 = vpack.c.bf16 %v195, %v195
    %v204 = vpack.c.bf16 %v196, %v196
    %v205 = vpack.c.bf16 %v197, %v197
    %v207 = vperm.slane %v172, 0
    %v337 = vunpack.c.l.b16 %v44
    %v338 = vunpack.c.l.b16 %v45
    %v339 = vunpack.c.l.b16 %v46
    %v340 = vunpack.c.l.b16 %v47
    %v341 = vunpack.c.l.b16 %v48
    %v342 = vunpack.c.l.b16 %v49
    %v343 = vunpack.c.l.b16 %v50
    %v344 = vunpack.c.l.b16 %v51
    %v345 = vunpack.c.l.b16 %v52
    %v346 = vunpack.c.l.b16 %v53
    %v347 = vunpack.c.l.b16 %v54
    %v348 = vunpack.c.l.b16 %v55
    %v349 = vunpack.c.l.b16 %v56
    %v350 = vunpack.c.l.b16 %v57
    %v351 = vunpack.c.l.b16 %v58
    %v352 = vunpack.c.l.b16 %v59
    %v353 = vunpack.c.l.b16 %v60
    %v354 = vunpack.c.l.b16 %v61
    %v355 = vunpack.c.l.b16 %v62
    %v356 = vunpack.c.l.b16 %v63
    %v357 = vunpack.c.l.b16 %v64
    %v358 = vunpack.c.l.b16 %v65
    %v359 = vunpack.c.l.b16 %v66
    %v360 = vunpack.c.l.b16 %v67
    %v361 = vunpack.c.l.b16 %v68
    %v362 = vunpack.c.l.b16 %v69
    %v363 = vunpack.c.l.b16 %v70
    %v364 = vunpack.c.l.b16 %v71
    %v365 = vunpack.c.l.b16 %v72
    %v366 = vunpack.c.l.b16 %v73
    %v367 = vunpack.c.l.b16 %v74
    %v368 = vunpack.c.l.b16 %v75
    %v369 = vunpack.c.l.b16 %v76
    %v370 = vunpack.c.l.b16 %v77
    %v371 = vunpack.c.l.b16 %v78
    %v372 = vunpack.c.l.b16 %v79
    %v373 = vunpack.c.l.b16 %v80
    %v374 = vunpack.c.l.b16 %v81
    %v375 = vunpack.c.l.b16 %v82
    %v376 = vunpack.c.l.b16 %v83
    %v377 = vunpack.c.l.b16 %v84
    %v378 = vunpack.c.l.b16 %v85
    %v379 = vunpack.c.l.b16 %v86
    %v380 = vunpack.c.l.b16 %v87
    %v381 = vunpack.c.l.b16 %v88
    %v382 = vunpack.c.l.b16 %v89
    %v383 = vunpack.c.l.b16 %v90
    %v384 = vunpack.c.l.b16 %v91
    %v385 = vunpack.c.l.b16 %v92
    %v386 = vunpack.c.l.b16 %v93
    %v387 = vunpack.c.l.b16 %v94
    %v388 = vunpack.c.l.b16 %v95
    %v389 = vunpack.c.l.b16 %v96
    %v390 = vunpack.c.l.b16 %v97
    %v391 = vunpack.c.l.b16 %v98
    %v392 = vunpack.c.l.b16 %v99
    %v393 = vunpack.c.l.b16 %v100
    %v394 = vunpack.c.l.b16 %v101
    %v395 = vunpack.c.l.b16 %v102
    %v396 = vunpack.c.l.b16 %v103
    %v397 = vunpack.c.l.b16 %v104
    %v398 = vunpack.c.l.b16 %v105
    %v399 = vunpack.c.l.b16 %v106
    %v400 = vunpack.c.l.b16 %v107
    %v401 = vunpack.c.l.b16 %v108
    %v402 = vunpack.c.l.b16 %v109
    %v403 = vunpack.c.l.b16 %v110
    %v404 = vunpack.c.l.b16 %v111
    %v405 = vunpack.c.l.b16 %v112
    %v406 = vunpack.c.l.b16 %v113
    %v407 = vunpack.c.l.b16 %v114
    %v408 = vunpack.c.l.b16 %v115
    %v409 = vunpack.c.l.b16 %v116
    %v410 = vunpack.c.l.b16 %v117
    %v411 = vunpack.c.l.b16 %v118
    %v412 = vunpack.c.l.b16 %v119
    %v413 = vunpack.c.l.b16 %v120
    %v414 = vunpack.c.l.b16 %v121
    %v415 = vunpack.c.l.b16 %v122
    %v416 = vunpack.c.l.b16 %v123
    %v417 = vunpack.c.l.b16 %v124
    %v418 = vunpack.c.l.b16 %v125
    %v419 = vunpack.c.l.b16 %v126
    %v420 = vunpack.c.l.b16 %v127
    %v421 = vunpack.c.l.b16 %v128
    %v422 = vunpack.c.l.b16 %v129
    %v423 = vunpack.c.l.b16 %v130
    %v424 = vunpack.c.l.b16 %v131
    %v425 = vunpack.c.l.b16 %v132
    %v426 = vunpack.c.l.b16 %v133
    %v427 = vunpack.c.l.b16 %v134
    %v428 = vunpack.c.l.b16 %v135
    %v429 = vunpack.c.l.b16 %v136
    %v430 = vunpack.c.l.b16 %v137
    %v431 = vunpack.c.l.b16 %v138
    %v432 = vunpack.c.l.b16 %v139
    %v433 = vunpack.c.l.b16 %v140
    %v434 = vunpack.c.l.b16 %v141
    %v435 = vunpack.c.l.b16 %v142
    %v436 = vunpack.c.l.b16 %v143
    %v437 = vunpack.c.l.b16 %v144
    %v438 = vunpack.c.l.b16 %v145
    %v439 = vunpack.c.l.b16 %v146
    %v440 = vunpack.c.l.b16 %v147
    %v441 = vunpack.c.l.b16 %v148
    %v442 = vunpack.c.l.b16 %v149
    %v443 = vunpack.c.l.b16 %v150
    %v444 = vunpack.c.l.b16 %v151
    %v445 = vunpack.c.l.b16 %v152
    %v446 = vunpack.c.l.b16 %v153
    %v447 = vunpack.c.l.b16 %v154
    %v448 = vunpack.c.l.b16 %v155
    %v449 = vunpack.c.l.b16 %v156
    %v450 = vunpack.c.l.b16 %v157
    %v451 = vunpack.c.l.b16 %v158
    %v452 = vunpack.c.l.b16 %v159
    %v453 = vunpack.c.l.b16 %v160
    %v454 = vunpack.c.l.b16 %v161
    %v455 = vunpack.c.l.b16 %v162
    %v456 = vunpack.c.l.b16 %v163
    %v457 = vunpack.c.l.b16 %v164
    %v458 = vunpack.c.l.b16 %v165
    %v459 = vunpack.c.l.b16 %v166
    %v460 = vunpack.c.l.b16 %v167
    %v461 = vunpack.c.l.b16 %v168
    %v462 = vunpack.c.l.b16 %v169
    %v463 = vunpack.c.l.b16 %v170
    %v464 = vunpack.c.l.b16 %v171
    %v465 = vpack.c.b16 %v338, %v337
    %v466 = vpack.c.b16 %v340, %v339
    %v467 = vpack.c.b16 %v342, %v341
    %v468 = vpack.c.b16 %v344, %v343
    %v469 = vpack.c.b16 %v346, %v345
    %v470 = vpack.c.b16 %v348, %v347
    %v471 = vpack.c.b16 %v350, %v349
    %v472 = vpack.c.b16 %v352, %v351
    %v473 = vpack.c.b16 %v354, %v353
    %v474 = vpack.c.b16 %v356, %v355
    %v475 = vpack.c.b16 %v358, %v357
    %v476 = vpack.c.b16 %v360, %v359
    %v477 = vpack.c.b16 %v362, %v361
    %v478 = vpack.c.b16 %v364, %v363
    %v479 = vpack.c.b16 %v366, %v365
    %v480 = vpack.c.b16 %v368, %v367
    %v481 = vpack.c.b16 %v370, %v369
    %v482 = vpack.c.b16 %v372, %v371
    %v483 = vpack.c.b16 %v374, %v373
    %v484 = vpack.c.b16 %v376, %v375
    %v485 = vpack.c.b16 %v378, %v377
    %v486 = vpack.c.b16 %v380, %v379
    %v487 = vpack.c.b16 %v382, %v381
    %v488 = vpack.c.b16 %v384, %v383
    %v489 = vpack.c.b16 %v386, %v385
    %v490 = vpack.c.b16 %v388, %v387
    %v491 = vpack.c.b16 %v390, %v389
    %v492 = vpack.c.b16 %v392, %v391
    %v493 = vpack.c.b16 %v394, %v393
    %v494 = vpack.c.b16 %v396, %v395
    %v495 = vpack.c.b16 %v398, %v397
    %v496 = vpack.c.b16 %v400, %v399
    %v497 = vpack.c.b16 %v402, %v401
    %v498 = vpack.c.b16 %v404, %v403
    %v499 = vpack.c.b16 %v406, %v405
    %v500 = vpack.c.b16 %v408, %v407
    %v501 = vpack.c.b16 %v410, %v409
    %v502 = vpack.c.b16 %v412, %v411
    %v503 = vpack.c.b16 %v414, %v413
    %v504 = vpack.c.b16 %v416, %v415
    %v505 = vpack.c.b16 %v418, %v417
    %v506 = vpack.c.b16 %v420, %v419
    %v507 = vpack.c.b16 %v422, %v421
    %v508 = vpack.c.b16 %v424, %v423
    %v509 = vpack.c.b16 %v426, %v425
    %v510 = vpack.c.b16 %v428, %v427
    %v511 = vpack.c.b16 %v430, %v429
    %v512 = vpack.c.b16 %v432, %v431
    %v513 = vpack.c.b16 %v434, %v433
    %v514 = vpack.c.b16 %v436, %v435
    %v515 = vpack.c.b16 %v438, %v437
    %v516 = vpack.c.b16 %v440, %v439
    %v517 = vpack.c.b16 %v442, %v441
    %v518 = vpack.c.b16 %v444, %v443
    %v519 = vpack.c.b16 %v446, %v445
    %v520 = vpack.c.b16 %v448, %v447
    %v521 = vpack.c.b16 %v450, %v449
    %v522 = vpack.c.b16 %v452, %v451
    %v523 = vpack.c.b16 %v454, %v453
    %v524 = vpack.c.b16 %v456, %v455
    %v525 = vpack.c.b16 %v458, %v457
    %v526 = vpack.c.b16 %v460, %v459
    %v527 = vpack.c.b16 %v462, %v461
    %v528 = vpack.c.b16 %v464, %v463
    %593 = vmatpush.bf16.msra.mxu0 %v472
    %594 = vmatpush.bf16.msra.mxu0 %v471
    %595 = vmatpush.bf16.msra.mxu0 %v470
    %596 = vmatpush.bf16.msra.mxu0 %v469
    %597 = vmatpush.bf16.msra.mxu0 %v468
    %598 = vmatpush.bf16.msra.mxu0 %v467
    %599 = vmatpush.bf16.msra.mxu0 %v466
    %600 = vmatpush.bf16.msra.mxu0 %v465
    %601 = vmatmul.bf16.gmra.mxu0 %v198
    %v602 = vpop.f32.mrf.mxu0
    %v603 = vadd.f32 %v207, %v602
    %v604 = vpop.f32.mrf.mxu0
    %605 = vdwg.mxu0
    %606 = vmatpush.bf16.msra.mxu0 %v480
    %607 = vmatpush.bf16.msra.mxu0 %v479
    %608 = vmatpush.bf16.msra.mxu0 %v478
    %609 = vmatpush.bf16.msra.mxu0 %v477
    %610 = vmatpush.bf16.msra.mxu0 %v476
    %611 = vmatpush.bf16.msra.mxu0 %v475
    %612 = vmatpush.bf16.msra.mxu0 %v474
    %613 = vmatpush.bf16.msra.mxu0 %v473
    %614 = vmatmul.bf16.gmra.mxu0 %v199
    %v615 = vpop.f32.mrf.mxu0
    %v616 = vadd.f32 %v603, %v615
    %v617 = vpop.f32.mrf.mxu0
    %618 = vdwg.mxu0
    %619 = vmatpush.bf16.msra.mxu0 %v488
    %620 = vmatpush.bf16.msra.mxu0 %v487
    %621 = vmatpush.bf16.msra.mxu0 %v486
    %622 = vmatpush.bf16.msra.mxu0 %v485
    %623 = vmatpush.bf16.msra.mxu0 %v484
    %624 = vmatpush.bf16.msra.mxu0 %v483
    %625 = vmatpush.bf16.msra.mxu0 %v482
    %626 = vmatpush.bf16.msra.mxu0 %v481
    %627 = vmatmul.bf16.gmra.mxu0 %v200
    %v628 = vpop.f32.mrf.mxu0
    %v629 = vadd.f32 %v616, %v628
    %v630 = vpop.f32.mrf.mxu0
    %631 = vdwg.mxu0
    %632 = vmatpush.bf16.msra.mxu0 %v496
    %633 = vmatpush.bf16.msra.mxu0 %v495
    %634 = vmatpush.bf16.msra.mxu0 %v494
    %635 = vmatpush.bf16.msra.mxu0 %v493
    %636 = vmatpush.bf16.msra.mxu0 %v492
    %637 = vmatpush.bf16.msra.mxu0 %v491
    %638 = vmatpush.bf16.msra.mxu0 %v490
    %639 = vmatpush.bf16.msra.mxu0 %v489
    %640 = vmatmul.bf16.gmra.mxu0 %v201
    %v641 = vpop.f32.mrf.mxu0
    %v642 = vadd.f32 %v629, %v641
    %v643 = vpop.f32.mrf.mxu0
    %644 = vdwg.mxu0
    %645 = vmatpush.bf16.msra.mxu0 %v504
    %646 = vmatpush.bf16.msra.mxu0 %v503
    %647 = vmatpush.bf16.msra.mxu0 %v502
    %648 = vmatpush.bf16.msra.mxu0 %v501
    %649 = vmatpush.bf16.msra.mxu0 %v500
    %650 = vmatpush.bf16.msra.mxu0 %v499
    %651 = vmatpush.bf16.msra.mxu0 %v498
    %652 = vmatpush.bf16.msra.mxu0 %v497
    %653 = vmatmul.bf16.gmra.mxu0 %v202
    %v654 = vpop.f32.mrf.mxu0
    %v655 = vadd.f32 %v642, %v654
    %v656 = vpop.f32.mrf.mxu0
    %657 = vdwg.mxu0
    %658 = vmatpush.bf16.msra.mxu0 %v512
    %659 = vmatpush.bf16.msra.mxu0 %v511
    %660 = vmatpush.bf16.msra.mxu0 %v510
    %661 = vmatpush.bf16.msra.mxu0 %v509
    %662 = vmatpush.bf16.msra.mxu0 %v508
    %663 = vmatpush.bf16.msra.mxu0 %v507
    %664 = vmatpush.bf16.msra.mxu0 %v506
    %665 = vmatpush.bf16.msra.mxu0 %v505
    %666 = vmatmul.bf16.gmra.mxu0 %v203
    %v667 = vpop.f32.mrf.mxu0
    %v668 = vadd.f32 %v655, %v667
    %v669 = vpop.f32.mrf.mxu0
    %670 = vdwg.mxu0
    %671 = vmatpush.bf16.msra.mxu0 %v520
    %672 = vmatpush.bf16.msra.mxu0 %v519
    %673 = vmatpush.bf16.msra.mxu0 %v518
    %674 = vmatpush.bf16.msra.mxu0 %v517
    %675 = vmatpush.bf16.msra.mxu0 %v516
    %676 = vmatpush.bf16.msra.mxu0 %v515
    %677 = vmatpush.bf16.msra.mxu0 %v514
    %678 = vmatpush.bf16.msra.mxu0 %v513
    %679 = vmatmul.bf16.gmra.mxu0 %v204
    %v680 = vpop.f32.mrf.mxu0
    %v681 = vadd.f32 %v668, %v680
    %v682 = vpop.f32.mrf.mxu0
    %683 = vdwg.mxu0
    %684 = vmatpush.bf16.msra.mxu0 %v528
    %685 = vmatpush.bf16.msra.mxu0 %v527
    %686 = vmatpush.bf16.msra.mxu0 %v526
    %687 = vmatpush.bf16.msra.mxu0 %v525
    %688 = vmatpush.bf16.msra.mxu0 %v524
    %689 = vmatpush.bf16.msra.mxu0 %v523
    %690 = vmatpush.bf16.msra.mxu0 %v522
    %691 = vmatpush.bf16.msra.mxu0 %v521
    %692 = vmatmul.bf16.gmra.mxu0 %v205
    %v693 = vpop.f32.mrf.mxu0
    %v694 = vadd.f32 %v681, %v693
    %v695 = vpop.f32.mrf.mxu0
    %696 = vdwg.mxu0
    %v697 = vmax.f32 %v694, 0.0
    %v698 = vpack.c.bf16 %v697, %v697
    %v700 = vperm.slane %v189, 0
    %v718 = vunpack.c.l.b16 %v173
    %v719 = vunpack.c.l.b16 %v174
    %v720 = vunpack.c.l.b16 %v175
    %v721 = vunpack.c.l.b16 %v176
    %v722 = vunpack.c.l.b16 %v177
    %v723 = vunpack.c.l.b16 %v178
    %v724 = vunpack.c.l.b16 %v179
    %v725 = vunpack.c.l.b16 %v180
    %v726 = vunpack.c.l.b16 %v181
    %v727 = vunpack.c.l.b16 %v182
    %v728 = vunpack.c.l.b16 %v183
    %v729 = vunpack.c.l.b16 %v184
    %v730 = vunpack.c.l.b16 %v185
    %v731 = vunpack.c.l.b16 %v186
    %v732 = vunpack.c.l.b16 %v187
    %v733 = vunpack.c.l.b16 %v188
    %v734 = vpack.c.b16 %v719, %v718
    %v735 = vpack.c.b16 %v721, %v720
    %v736 = vpack.c.b16 %v723, %v722
    %v737 = vpack.c.b16 %v725, %v724
    %v738 = vpack.c.b16 %v727, %v726
    %v739 = vpack.c.b16 %v729, %v728
    %v740 = vpack.c.b16 %v731, %v730
    %v741 = vpack.c.b16 %v733, %v732
    %750 = vmatpush.bf16.msra.mxu0 %v741
    %751 = vmatpush.bf16.msra.mxu0 %v740
    %752 = vmatpush.bf16.msra.mxu0 %v739
    %753 = vmatpush.bf16.msra.mxu0 %v738
    %754 = vmatpush.bf16.msra.mxu0 %v737
    %755 = vmatpush.bf16.msra.mxu0 %v736
    %756 = vmatpush.bf16.msra.mxu0 %v735
    %757 = vmatpush.bf16.msra.mxu0 %v734
    %758 = vmatmul.bf16.gmra.mxu0 %v698
    %v759 = vpop.f32.mrf.mxu0
    %v760 = vadd.f32 %v700, %v759
    %v761 = vpop.f32.mrf.mxu0
    %762 = vdwg.mxu0
    %v763 = vld [vmem:[%s1] sm:$0xff]
    %v764 = vld [vmem:[%s1 + $0x8] sm:$0xff]
    %v765 = vld [vmem:[%s1 + $0x10] sm:$0xff]
    %v766 = vld [vmem:[%s1 + $0x18] sm:$0xff]
    %v767 = vld [vmem:[%s1 + $0x20] sm:$0xff]
    %v768 = vld [vmem:[%s1 + $0x28] sm:$0xff]
    %v769 = vld [vmem:[%s1 + $0x30] sm:$0xff]
    %v770 = vld [vmem:[%s1 + $0x38] sm:$0xff]
    %v771 = vpack.c.bf16 %v763, %v763
    %v772 = vpack.c.bf16 %v764, %v764
    %v773 = vpack.c.bf16 %v765, %v765
    %v774 = vpack.c.bf16 %v766, %v766
    %v775 = vpack.c.bf16 %v767, %v767
    %v776 = vpack.c.bf16 %v768, %v768
    %v777 = vpack.c.bf16 %v769, %v769
    %v778 = vpack.c.bf16 %v770, %v770
    %779 = vmatpush.bf16.msra.mxu0 %v472
    %780 = vmatpush.bf16.msra.mxu0 %v471
    %781 = vmatpush.bf16.msra.mxu0 %v470
    %782 = vmatpush.bf16.msra.mxu0 %v469
    %783 = vmatpush.bf16.msra.mxu0 %v468
    %784 = vmatpush.bf16.msra.mxu0 %v467
    %785 = vmatpush.bf16.msra.mxu0 %v466
    %786 = vmatpush.bf16.msra.mxu0 %v465
    %787 = vmatmul.bf16.gmra.mxu0 %v771
    %v788 = vpop.f32.mrf.mxu0
    %v789 = vadd.f32 %v207, %v788
    %v790 = vpop.f32.mrf.mxu0
    %791 = vdwg.mxu0
    %792 = vmatpush.bf16.msra.mxu0 %v480
    %793 = vmatpush.bf16.msra.mxu0 %v479
    %794 = vmatpush.bf16.msra.mxu0 %v478
    %795 = vmatpush.bf16.msra.mxu0 %v477
    %796 = vmatpush.bf16.msra.mxu0 %v476
    %797 = vmatpush.bf16.msra.mxu0 %v475
    %798 = vmatpush.bf16.msra.mxu0 %v474
    %799 = vmatpush.bf16.msra.mxu0 %v473
    %800 = vmatmul.bf16.gmra.mxu0 %v772
    %v801 = vpop.f32.mrf.mxu0
    %v802 = vadd.f32 %v789, %v801
    %v803 = vpop.f32.mrf.mxu0
    %804 = vdwg.mxu0
    %805 = vmatpush.bf16.msra.mxu0 %v488
    %806 = vmatpush.bf16.msra.mxu0 %v487
    %807 = vmatpush.bf16.msra.mxu0 %v486
    %808 = vmatpush.bf16.msra.mxu0 %v485
    %809 = vmatpush.bf16.msra.mxu0 %v484
    %810 = vmatpush.bf16.msra.mxu0 %v483
    %811 = vmatpush.bf16.msra.mxu0 %v482
    %812 = vmatpush.bf16.msra.mxu0 %v481
    %813 = vmatmul.bf16.gmra.mxu0 %v773
    %v814 = vpop.f32.mrf.mxu0
    %v815 = vadd.f32 %v802, %v814
    %v816 = vpop.f32.mrf.mxu0
    %817 = vdwg.mxu0
    %818 = vmatpush.bf16.msra.mxu0 %v496
    %819 = vmatpush.bf16.msra.mxu0 %v495
    %820 = vmatpush.bf16.msra.mxu0 %v494
    %821 = vmatpush.bf16.msra.mxu0 %v493
    %822 = vmatpush.bf16.msra.mxu0 %v492
    %823 = vmatpush.bf16.msra.mxu0 %v491
    %824 = vmatpush.bf16.msra.mxu0 %v490
    %825 = vmatpush.bf16.msra.mxu0 %v489
    %826 = vmatmul.bf16.gmra.mxu0 %v774
    %v827 = vpop.f32.mrf.mxu0
    %v828 = vadd.f32 %v815, %v827
    %v829 = vpop.f32.mrf.mxu0
    %830 = vdwg.mxu0
    %831 = vmatpush.bf16.msra.mxu0 %v504
    %832 = vmatpush.bf16.msra.mxu0 %v503
    %833 = vmatpush.bf16.msra.mxu0 %v502
    %834 = vmatpush.bf16.msra.mxu0 %v501
    %835 = vmatpush.bf16.msra.mxu0 %v500
    %836 = vmatpush.bf16.msra.mxu0 %v499
    %837 = vmatpush.bf16.msra.mxu0 %v498
    %838 = vmatpush.bf16.msra.mxu0 %v497
    %839 = vmatmul.bf16.gmra.mxu0 %v775
    %v840 = vpop.f32.mrf.mxu0
    %v841 = vadd.f32 %v828, %v840
    %v842 = vpop.f32.mrf.mxu0
    %843 = vdwg.mxu0
    %844 = vmatpush.bf16.msra.mxu0 %v512
    %845 = vmatpush.bf16.msra.mxu0 %v511
    %846 = vmatpush.bf16.msra.mxu0 %v510
    %847 = vmatpush.bf16.msra.mxu0 %v509
    %848 = vmatpush.bf16.msra.mxu0 %v508
    %849 = vmatpush.bf16.msra.mxu0 %v507
    %850 = vmatpush.bf16.msra.mxu0 %v506
    %851 = vmatpush.bf16.msra.mxu0 %v505
    %852 = vmatmul.bf16.gmra.mxu0 %v776
    %v853 = vpop.f32.mrf.mxu0
    %v854 = vadd.f32 %v841, %v853
    %v855 = vpop.f32.mrf.mxu0
    %856 = vdwg.mxu0
    %857 = vmatpush.bf16.msra.mxu0 %v520
    %858 = vmatpush.bf16.msra.mxu0 %v519
    %859 = vmatpush.bf16.msra.mxu0 %v518
    %860 = vmatpush.bf16.msra.mxu0 %v517
    %861 = vmatpush.bf16.msra.mxu0 %v516
    %862 = vmatpush.bf16.msra.mxu0 %v515
    %863 = vmatpush.bf16.msra.mxu0 %v514
    %864 = vmatpush.bf16.msra.mxu0 %v513
    %865 = vmatmul.bf16.gmra.mxu0 %v777
    %v866 = vpop.f32.mrf.mxu0
    %v867 = vadd.f32 %v854, %v866
    %v868 = vpop.f32.mrf.mxu0
    %869 = vdwg.mxu0
    %870 = vmatpush.bf16.msra.mxu0 %v528
    %871 = vmatpush.bf16.msra.mxu0 %v527
    %872 = vmatpush.bf16.msra.mxu0 %v526
    %873 = vmatpush.bf16.msra.mxu0 %v525
    %874 = vmatpush.bf16.msra.mxu0 %v524
    %875 = vmatpush.bf16.msra.mxu0 %v523
    %876 = vmatpush.bf16.msra.mxu0 %v522
    %877 = vmatpush.bf16.msra.mxu0 %v521
    %878 = vmatmul.bf16.gmra.mxu0 %v778
    %v879 = vpop.f32.mrf.mxu0
    %v880 = vadd.f32 %v867, %v879
    %v881 = vpop.f32.mrf.mxu0
    %882 = vdwg.mxu0
    %v883 = vmax.f32 %v880, 0.0
    %v884 = vpack.c.bf16 %v883, %v883
    %885 = vmatpush.bf16.msra.mxu0 %v741
    %886 = vmatpush.bf16.msra.mxu0 %v740
    %887 = vmatpush.bf16.msra.mxu0 %v739
    %888 = vmatpush.bf16.msra.mxu0 %v738
    %889 = vmatpush.bf16.msra.mxu0 %v737
    %890 = vmatpush.bf16.msra.mxu0 %v736
    %891 = vmatpush.bf16.msra.mxu0 %v735
    %892 = vmatpush.bf16.msra.mxu0 %v734
    %893 = vmatmul.bf16.gmra.mxu0 %v884
    %v894 = vpop.f32.mrf.mxu0
    %v895 = vadd.f32 %v700, %v894
    %v896 = vpop.f32.mrf.mxu0
    %897 = vdwg.mxu0
    %v898 = vld [vmem:[%s2] sm:$0xff]
    %v899 = vld [vmem:[%s2 + $0x8] sm:$0xff]
    %v900 = vld [vmem:[%s2 + $0x10] sm:$0xff]
    %v901 = vld [vmem:[%s2 + $0x18] sm:$0xff]
    %v902 = vld [vmem:[%s2 + $0x20] sm:$0xff]
    %v903 = vld [vmem:[%s2 + $0x28] sm:$0xff]
    %v904 = vld [vmem:[%s2 + $0x30] sm:$0xff]
    %v905 = vld [vmem:[%s2 + $0x38] sm:$0xff]
    %v906 = vpack.c.bf16 %v898, %v898
    %v907 = vpack.c.bf16 %v899, %v899
    %v908 = vpack.c.bf16 %v900, %v900
    %v909 = vpack.c.bf16 %v901, %v901
    %v910 = vpack.c.bf16 %v902, %v902
    %v911 = vpack.c.bf16 %v903, %v903
    %v912 = vpack.c.bf16 %v904, %v904
    %v913 = vpack.c.bf16 %v905, %v905
    %914 = vmatpush.bf16.msra.mxu0 %v472
    %915 = vmatpush.bf16.msra.mxu0 %v471
    %916 = vmatpush.bf16.msra.mxu0 %v470
    %917 = vmatpush.bf16.msra.mxu0 %v469
    %918 = vmatpush.bf16.msra.mxu0 %v468
    %919 = vmatpush.bf16.msra.mxu0 %v467
    %920 = vmatpush.bf16.msra.mxu0 %v466
    %921 = vmatpush.bf16.msra.mxu0 %v465
    %922 = vmatmul.bf16.gmra.mxu0 %v906
    %v923 = vpop.f32.mrf.mxu0
    %v924 = vadd.f32 %v207, %v923
    %v925 = vpop.f32.mrf.mxu0
    %926 = vdwg.mxu0
    %927 = vmatpush.bf16.msra.mxu0 %v480
    %928 = vmatpush.bf16.msra.mxu0 %v479
    %929 = vmatpush.bf16.msra.mxu0 %v478
    %930 = vmatpush.bf16.msra.mxu0 %v477
    %931 = vmatpush.bf16.msra.mxu0 %v476
    %932 = vmatpush.bf16.msra.mxu0 %v475
    %933 = vmatpush.bf16.msra.mxu0 %v474
    %934 = vmatpush.bf16.msra.mxu0 %v473
    %935 = vmatmul.bf16.gmra.mxu0 %v907
    %v936 = vpop.f32.mrf.mxu0
    %v937 = vadd.f32 %v924, %v936
    %v938 = vpop.f32.mrf.mxu0
    %939 = vdwg.mxu0
    %940 = vmatpush.bf16.msra.mxu0 %v488
    %941 = vmatpush.bf16.msra.mxu0 %v487
    %942 = vmatpush.bf16.msra.mxu0 %v486
    %943 = vmatpush.bf16.msra.mxu0 %v485
    %944 = vmatpush.bf16.msra.mxu0 %v484
    %945 = vmatpush.bf16.msra.mxu0 %v483
    %946 = vmatpush.bf16.msra.mxu0 %v482
    %947 = vmatpush.bf16.msra.mxu0 %v481
    %948 = vmatmul.bf16.gmra.mxu0 %v908
    %v949 = vpop.f32.mrf.mxu0
    %v950 = vadd.f32 %v937, %v949
    %v951 = vpop.f32.mrf.mxu0
    %952 = vdwg.mxu0
    %953 = vmatpush.bf16.msra.mxu0 %v496
    %954 = vmatpush.bf16.msra.mxu0 %v495
    %955 = vmatpush.bf16.msra.mxu0 %v494
    %956 = vmatpush.bf16.msra.mxu0 %v493
    %957 = vmatpush.bf16.msra.mxu0 %v492
    %958 = vmatpush.bf16.msra.mxu0 %v491
    %959 = vmatpush.bf16.msra.mxu0 %v490
    %960 = vmatpush.bf16.msra.mxu0 %v489
    %961 = vmatmul.bf16.gmra.mxu0 %v909
    %v962 = vpop.f32.mrf.mxu0
    %v963 = vadd.f32 %v950, %v962
    %v964 = vpop.f32.mrf.mxu0
    %965 = vdwg.mxu0
    %966 = vmatpush.bf16.msra.mxu0 %v504
    %967 = vmatpush.bf16.msra.mxu0 %v503
    %968 = vmatpush.bf16.msra.mxu0 %v502
    %969 = vmatpush.bf16.msra.mxu0 %v501
    %970 = vmatpush.bf16.msra.mxu0 %v500
    %971 = vmatpush.bf16.msra.mxu0 %v499
    %972 = vmatpush.bf16.msra.mxu0 %v498
    %973 = vmatpush.bf16.msra.mxu0 %v497
    %974 = vmatmul.bf16.gmra.mxu0 %v910
    %v975 = vpop.f32.mrf.mxu0
    %v976 = vadd.f32 %v963, %v975
    %v977 = vpop.f32.mrf.mxu0
    %978 = vdwg.mxu0
    %979 = vmatpush.bf16.msra.mxu0 %v512
    %980 = vmatpush.bf16.msra.mxu0 %v511
    %981 = vmatpush.bf16.msra.mxu0 %v510
    %982 = vmatpush.bf16.msra.mxu0 %v509
    %983 = vmatpush.bf16.msra.mxu0 %v508
    %984 = vmatpush.bf16.msra.mxu0 %v507
    %985 = vmatpush.bf16.msra.mxu0 %v506
    %986 = vmatpush.bf16.msra.mxu0 %v505
    %987 = vmatmul.bf16.gmra.mxu0 %v911
    %v988 = vpop.f32.mrf.mxu0
    %v989 = vadd.f32 %v976, %v988
    %v990 = vpop.f32.mrf.mxu0
    %991 = vdwg.mxu0
    %992 = vmatpush.bf16.msra.mxu0 %v520
    %993 = vmatpush.bf16.msra.mxu0 %v519
    %994 = vmatpush.bf16.msra.mxu0 %v518
    %995 = vmatpush.bf16.msra.mxu0 %v517
    %996 = vmatpush.bf16.msra.mxu0 %v516
    %997 = vmatpush.bf16.msra.mxu0 %v515
    %998 = vmatpush.bf16.msra.mxu0 %v514
    %999 = vmatpush.bf16.msra.mxu0 %v513
    %1000 = vmatmul.bf16.gmra.mxu0 %v912
    %v1001 = vpop.f32.mrf.mxu0
    %v1002 = vadd.f32 %v989, %v1001
    %v1003 = vpop.f32.mrf.mxu0
    %1004 = vdwg.mxu0
    %1005 = vmatpush.bf16.msra.mxu0 %v528
    %1006 = vmatpush.bf16.msra.mxu0 %v527
    %1007 = vmatpush.bf16.msra.mxu0 %v526
    %1008 = vmatpush.bf16.msra.mxu0 %v525
    %1009 = vmatpush.bf16.msra.mxu0 %v524
    %1010 = vmatpush.bf16.msra.mxu0 %v523
    %1011 = vmatpush.bf16.msra.mxu0 %v522
    %1012 = vmatpush.bf16.msra.mxu0 %v521
    %1013 = vmatmul.bf16.gmra.mxu0 %v913
    %v1014 = vpop.f32.mrf.mxu0
    %v1015 = vadd.f32 %v1002, %v1014
    %v1016 = vpop.f32.mrf.mxu0
    %1017 = vdwg.mxu0
    %v1018 = vmax.f32 %v1015, 0.0
    %v1019 = vpack.c.bf16 %v1018, %v1018
    %1020 = vmatpush.bf16.msra.mxu0 %v741
    %1021 = vmatpush.bf16.msra.mxu0 %v740
    %1022 = vmatpush.bf16.msra.mxu0 %v739
    %1023 = vmatpush.bf16.msra.mxu0 %v738
    %1024 = vmatpush.bf16.msra.mxu0 %v737
    %1025 = vmatpush.bf16.msra.mxu0 %v736
    %1026 = vmatpush.bf16.msra.mxu0 %v735
    %1027 = vmatpush.bf16.msra.mxu0 %v734
    %1028 = vmatmul.bf16.gmra.mxu0 %v1019
    %v1029 = vpop.f32.mrf.mxu0
    %v1030 = vadd.f32 %v700, %v1029
    %v1031 = vpop.f32.mrf.mxu0
    %1032 = vdwg.mxu0
    %v1033 = vsub.f32 %v760, %v895
    %v1034 = vsub.f32 %v760, %v1030
    %v1035 = vadd.f32 %v1033, 1e-06
    %v1036 = vmul.f32 %v1035, %v1035
    %1037 = vadd.xlane.f32.xlu0 %v1036
    %v1038 = vpop.xlane.xlu0 %1037
    %v1039 = vrsqrt.pop %v1038
    %v1040 = vmul.f32 %v1039, %v1038
    %v1041 = vmul.f32 %v1040, %v1039
    %v1042 = vmul.f32 0.5, %v1041
    %v1043 = vsub.f32 1.5, %v1042
    %v1044 = vmul.f32 %v1039, %v1043
    %v1045 = vmul.f32 %v1038, %v1044
    %vm1046 = vcmp.eq.f32.partialorder %v1038, inf
    %v1047 = vsel %vm1046, %v1038, %v1045
    %vm1048 = vcmp.eq.f32.partialorder %v1038, 0.0
    %v1049 = vand.u32 %v1038, 2147483648
    %v1050 = vsel %vm1048, %v1049, %v1047
    %v1051 = vadd.f32 %v1034, 1e-06
    %v1052 = vmul.f32 %v1051, %v1051
    %1053 = vadd.xlane.f32.xlu0 %v1052
    %v1054 = vpop.xlane.xlu0 %1053
    %v1055 = vrsqrt.pop %v1054
    %v1056 = vmul.f32 %v1055, %v1054
    %v1057 = vmul.f32 %v1056, %v1055
    %v1058 = vmul.f32 0.5, %v1057
    %v1059 = vsub.f32 1.5, %v1058
    %v1060 = vmul.f32 %v1055, %v1059
    %v1061 = vmul.f32 %v1054, %v1060
    %vm1062 = vcmp.eq.f32.partialorder %v1054, inf
    %v1063 = vsel %vm1062, %v1054, %v1061
    %vm1064 = vcmp.eq.f32.partialorder %v1054, 0.0
    %v1065 = vand.u32 %v1054, 2147483648
    %v1066 = vsel %vm1064, %v1065, %v1063
    %v1067 = vsub.f32 %v1050, %v1066
    %v1068 = vadd.f32 %v1067, 1.0
    %v1069 = vmax.f32 %v1068, 0.0
    %v1070 = vmul.f32 %v1033, %v1033
    %1071 = vadd.xlane.f32.xlu0 %v1070
    %v1072 = vpop.xlane.xlu0 %1071
    %v1073 = vmul.f32 %v1034, %v1034
    %1074 = vadd.xlane.f32.xlu0 %v1073
    %v1075 = vpop.xlane.xlu0 %1074
    %vm1076 = vcmp.ge.f32.partialorder %v1072, %v1075
    %v1077 = vsel %vm1076, 0.0, 1.0
    %1078 = vst [vmem:[%s7] sm:$0xff] %v1069
    %1079 = vst [vmem:[%s8] sm:$0xff] %v1077
    // Predicated region
    $region34: #{triplet_stats.1} parent=1 // pred_check
      _
    $region35: #{triplet_stats.1} parent=1 // pred_check_branch
      %1081 = sbr.rel (0) target = $region37
    $region36: #{triplet_stats.1} parent=1 // pred_region
      _
    $region37: #{triplet_stats.1} parent=1 // pred_fallthru
      _
    // Predicated region
    $region38: #{triplet_stats.1} parent=1 // pred_check
      _
    $region39: #{triplet_stats.1} parent=1 // pred_check_branch
      %1083 = sbr.rel (0) target = $region41
    $region40: #{triplet_stats.1} parent=1 // pred_region
      _
    $region41: #{triplet_stats.1} parent=1 // pred_fallthru
      _
    // Predicated region
    $region42: #{triplet_stats.1} parent=1 // pred_check
      _
    $region43: #{triplet_stats.1} parent=1 // pred_check_branch
      %1085 = sbr.rel (0) target = $region45
    $region44: #{triplet_stats.1} parent=1 // pred_region
      _
    $region45: #{triplet_stats.1} parent=1 // pred_fallthru
      _
    // Predicated region
    $region46: #{triplet_stats.1} parent=1 // pred_check
      _
    $region47: #{triplet_stats.1} parent=1 // pred_check_branch
      %1087 = sbr.rel (0) target = $region49
    $region48: #{triplet_stats.1} parent=1 // pred_region
      _
    $region49: #{triplet_stats.1} parent=1 // pred_fallthru
      _
    %1088 = vsyncpa [#allocation3], 1

</llo_original>
